<compile_context>
chip_gen: v7x
topology: tpu7x:2x2x1
jax: 0.10.0
libtpu: 0.0.40
codegen_flags: <defaults>
</compile_context>

<pallas_src>
import jax
import jax.numpy as jnp
from jax.experimental import pallas as pl
from jax.experimental.pallas import tpu as pltpu


# ---------------------------------------------------------------------------
# AddBias (4D NCHW path): out = x + bias[None, :, None, None]
# ---------------------------------------------------------------------------
def _add_bias_nchw_kernel(x_ref, b_ref, o_ref):
    # x_ref: (tile_n, C, H*W), b_ref: (1, C, 1) -> broadcast over batch and lanes
    o_ref[...] = x_ref[...].astype(o_ref.dtype) + b_ref[...].astype(o_ref.dtype)


def add_bias_pallas(x, bias_param):
    """AddBias.forward.  bias_param has shape (C, 1) (the nn.Parameter)."""
    C = bias_param.shape[0]
    out_dtype = jnp.result_type(x.dtype, bias_param.dtype)  # torch-style promotion

    if x.ndim == 2:
        # Tiny policy-head tensors: kernel launch + pipeline prologue > total work.
        return x.astype(out_dtype) + bias_param.reshape(1, C).astype(out_dtype)

    if x.ndim != 4:
        raise ValueError("AddBias expects 2D or 4D input")

    N, Cx, H, W = x.shape
    assert Cx == C
    HW = H * W
    # Contiguous reshape only (no transpose -> no extra HBM read/write passes).
    x3 = x.reshape(N, C, HW)
    b3 = bias_param.reshape(1, C, 1)

    # Tile along N aiming at ~2 MiB per block: stays within the 32 MiB scoped-VMEM
    # budget with double-buffered input + output, even on v7x's 64 MiB VMEM, while
    # keeping per-grid-step overhead (~0.35 us) negligible.
    bytes_per_n = C * HW * jnp.dtype(out_dtype).itemsize
    tile_n = max(1, min(N, (2 * 1024 * 1024) // max(1, bytes_per_n)))
    grid = (pl.cdiv(N, tile_n),)  # ragged last block: Pallas masks OOB stores

    out3 = pl.pallas_call(
        _add_bias_nchw_kernel,
        out_shape=jax.ShapeDtypeStruct((N, C, HW), out_dtype),
        grid_spec=pltpu.PrefetchScalarGridSpec(
            num_scalar_prefetch=0,
            grid=grid,
            in_specs=[
                pl.BlockSpec((tile_n, C, HW), lambda i: (i, 0, 0)),
                # Constant block index -> Pallas keeps the tiny bias resident
                # (no per-step re-DMA).
                pl.BlockSpec((1, C, 1), lambda i: (0, 0, 0)),
            ],
            out_specs=pl.BlockSpec((tile_n, C, HW), lambda i: (i, 0, 0)),
        ),
        compiler_params=pltpu.CompilerParams(
            dimension_semantics=("parallel",),
            vmem_limit_bytes=32 * 1024 * 1024,
        ),
    )(x3, b3)

    return out3.reshape(N, C, H, W)


# ---------------------------------------------------------------------------
# DiagGaussian forward: fused Linear + std = exp(logstd bias) broadcast
# ---------------------------------------------------------------------------
def _diag_gaussian_kernel(x_ref, wt_ref, bfc_ref, logstd_ref, mean_ref, std_ref):
    # x_ref: (tile_n, K), wt_ref: (K, M), bfc_ref/logstd_ref: (1, M)
    acc = jnp.dot(x_ref[...], wt_ref[...], preferred_element_type=jnp.float32)
    acc = acc + bfc_ref[...].astype(jnp.float32)
    mean_ref[...] = acc.astype(mean_ref.dtype)
    # action_logstd = AddBias(zeros) = logstd bias broadcast; std = exp(logstd)
    std = jnp.exp(logstd_ref[...].astype(jnp.float32))          # (1, M)
    std_ref[...] = jnp.broadcast_to(std, std_ref.shape).astype(std_ref.dtype)


def diag_gaussian_forward(x, fc_weight, fc_bias, logstd_param):
    """DiagGaussian.forward -> (action_mean, action_std).

    fc_weight:    (num_outputs, num_inputs)   torch nn.Linear layout
    fc_bias:      (num_outputs,)
    logstd_param: (num_outputs, 1)            AddBias._bias parameter
    """
    N, K = x.shape
    M = fc_weight.shape[0]
    wt = fc_weight.T                      # (K, M); tiny host-side transpose
    bfc = fc_bias.reshape(1, M)
    logstd = logstd_param.reshape(1, M)

    mean_dtype = jnp.result_type(x.dtype, fc_weight.dtype, fc_bias.dtype)
    std_dtype = jnp.result_type(jnp.float32, logstd_param.dtype)  # torch.zeros is f32

    # Batch tile: full batch when small (block == full extent is always legal),
    # otherwise 512 rows (multiple of 8) with a masked ragged last block.
    tile_n = N if N <= 512 else 512
    grid = (pl.cdiv(N, tile_n),)

    mean, std = pl.pallas_call(
        _diag_gaussian_kernel,
        out_shape=(
            jax.ShapeDtypeStruct((N, M), mean_dtype),
            jax.ShapeDtypeStruct((N, M), std_dtype),
        ),
        grid_spec=pltpu.PrefetchScalarGridSpec(
            num_scalar_prefetch=0,
            grid=grid,
            in_specs=[
                pl.BlockSpec((tile_n, K), lambda i: (i, 0)),
                pl.BlockSpec((K, M), lambda i: (0, 0)),      # weights resident
                pl.BlockSpec((1, M), lambda i: (0, 0)),      # fc bias resident
                pl.BlockSpec((1, M), lambda i: (0, 0)),      # logstd resident
            ],
            out_specs=(
                pl.BlockSpec((tile_n, M), lambda i: (i, 0)),
                pl.BlockSpec((tile_n, M), lambda i: (i, 0)),
            ),
        ),
        compiler_params=pltpu.CompilerParams(
            dimension_semantics=("parallel",),
            vmem_limit_bytes=32 * 1024 * 1024,
        ),
    )(x, wt, bfc, logstd)

    # TODO(synk): FixedNormal distribution object has no Pallas equivalent; we
    # return its parameters (mean, std) instead.
    return mean, std


if __name__ == "__main__":
    key = jax.random.PRNGKey(0)
    k1, k2, k3, k4, k5, k6 = jax.random.split(key, 6)

    # ---- DiagGaussian head: batch=2, num_inputs(hidden)=32, num_outputs=4 ----
    N, K, M = 2, 32, 4
    x = jax.random.normal(k1, (N, K), dtype=jnp.float32)
    fc_weight = 0.01 * jax.random.normal(k2, (M, K), dtype=jnp.float32)
    fc_bias = 0.01 * jax.random.normal(k3, (M,), dtype=jnp.float32)
    logstd_param = 0.1 * jax.random.normal(k4, (M, 1), dtype=jnp.float32)

    mean, std = diag_gaussian_forward(x, fc_weight, fc_bias, logstd_param)
    mean = jax.block_until_ready(mean)
    std = jax.block_until_ready(std)

    ref_mean = x @ fc_weight.T + fc_bias.reshape(1, M)
    ref_std = jnp.exp(jnp.zeros((N, M), jnp.float32) + logstd_param.reshape(1, M))
    assert jnp.allclose(mean, ref_mean, atol=1e-3, rtol=1e-2), "mean mismatch"
    assert jnp.allclose(std, ref_std, atol=1e-6), "std mismatch"

    # ---- AddBias standalone, 4D NCHW path (optimized lane-dense layout) ----
    C, H, W = 4, 16, 16
    bias_param = jax.random.normal(k5, (C, 1), dtype=jnp.float32)
    x4 = jax.random.normal(k6, (2, C, H, W), dtype=jnp.float32)
    y4 = jax.block_until_ready(add_bias_pallas(x4, bias_param))
    assert jnp.allclose(y4, x4 + bias_param.reshape(1, C, 1, 1), atol=1e-6), "4D mismatch"

    # ---- AddBias 2D small case (as used inside DiagGaussian) ----
    x2 = jax.random.normal(k1, (2, C), dtype=jnp.float32)
    y2 = jax.block_until_ready(add_bias_pallas(x2, bias_param))
    assert jnp.allclose(y2, x2 + bias_param.reshape(1, C), atol=1e-6), "2D mismatch"

    print("KERNEL_OK")
</pallas_src>

<mosaic_0001>
module attributes {stable_mosaic.version = 11 : i64} {
  func.func @_diag_gaussian_kernel(%arg0: i32, %arg1: memref<2x32xf32, #tpu.memory_space<vmem>>, %arg2: memref<32x4xf32, #tpu.memory_space<vmem>>, %arg3: memref<1x4xf32, #tpu.memory_space<vmem>>, %arg4: memref<1x4xf32, #tpu.memory_space<vmem>>, %arg5: memref<2x4xf32, #tpu.memory_space<vmem>>, %arg6: memref<2x4xf32, #tpu.memory_space<vmem>>) attributes {dimension_semantics = [#tpu.dimension_semantics<parallel>], iteration_bounds = array<i64: 1>, scalar_prefetch = 0 : i64, scratch_operands = 0 : i64, tpu.core_type = #tpu.core_type<tc>, window_params = [{transform_indices = @transform_0, window_bounds = array<i64: 2, 32>}, {pipeline_mode = #tpu.pipeline_mode<synchronous>, transform_indices = @transform_1, window_bounds = array<i64: 32, 4>}, {pipeline_mode = #tpu.pipeline_mode<synchronous>, transform_indices = @transform_2, window_bounds = array<i64: 1, 4>}, {pipeline_mode = #tpu.pipeline_mode<synchronous>, transform_indices = @transform_3, window_bounds = array<i64: 1, 4>}, {transform_indices = @transform_4, window_bounds = array<i64: 2, 4>}, {transform_indices = @transform_5, window_bounds = array<i64: 2, 4>}]} {
    %c0 = arith.constant 0 : index
    %c0_0 = arith.constant 0 : index
    %0 = vector.load %arg1[%c0, %c0_0] : memref<2x32xf32, #tpu.memory_space<vmem>>, vector<2x32xf32>
    %c0_1 = arith.constant 0 : index
    %c0_2 = arith.constant 0 : index
    %1 = vector.load %arg2[%c0_1, %c0_2] : memref<32x4xf32, #tpu.memory_space<vmem>>, vector<32x4xf32>
    %cst = arith.constant dense<0.000000e+00> : vector<2x4xf32>
    %2 = tpu.matmul %0, %1, %cst {dimension_numbers = #tpu.dot_dimension_numbers<[1], [0], [0], [1], [0, 0, 1, 1], [], []>} : vector<2x32xf32>, vector<32x4xf32>, vector<2x4xf32> -> vector<2x4xf32>
    %c0_3 = arith.constant 0 : index
    %c0_4 = arith.constant 0 : index
    %3 = vector.load %arg3[%c0_3, %c0_4] : memref<1x4xf32, #tpu.memory_space<vmem>>, vector<1x4xf32>
    %4 = vector.broadcast %3 : vector<1x4xf32> to vector<2x4xf32>
    %5 = arith.addf %2, %4 : vector<2x4xf32>
    %c0_5 = arith.constant 0 : index
    %c0_6 = arith.constant 0 : index
    %6 = vector.load %arg5[%c0_5, %c0_6] : memref<2x4xf32, #tpu.memory_space<vmem>>, vector<2x4xf32>
    tpu.vector_store %arg5[%c0_5, %c0_6], %5 {strides = array<i32>} : memref<2x4xf32, #tpu.memory_space<vmem>>, vector<2x4xf32>,
    %c0_7 = arith.constant 0 : index
    %c0_8 = arith.constant 0 : index
    %7 = vector.load %arg4[%c0_7, %c0_8] : memref<1x4xf32, #tpu.memory_space<vmem>>, vector<1x4xf32>
    %8 = math.exp %7 : vector<1x4xf32>
    %9 = vector.shape_cast %8 : vector<1x4xf32> to vector<1x4xf32>
    %10 = vector.broadcast %9 : vector<1x4xf32> to vector<2x4xf32>
    %c0_9 = arith.constant 0 : index
    %c0_10 = arith.constant 0 : index
    %11 = vector.load %arg6[%c0_9, %c0_10] : memref<2x4xf32, #tpu.memory_space<vmem>>, vector<2x4xf32>
    tpu.vector_store %arg6[%c0_9, %c0_10], %10 {strides = array<i32>} : memref<2x4xf32, #tpu.memory_space<vmem>>, vector<2x4xf32>,
    return
  }
  func.func @transform_0(%arg0: i32) -> (i32, i32) {
    %c0_i32 = arith.constant 0 : i32
    %c0_i32_0 = arith.constant 0 : i32
    return %arg0, %c0_i32 : i32, i32
  }
  func.func @transform_1(%arg0: i32) -> (i32, i32) {
    %c0_i32 = arith.constant 0 : i32
    %c0_i32_0 = arith.constant 0 : i32
    %c0_i32_1 = arith.constant 0 : i32
    return %c0_i32, %c0_i32_0 : i32, i32
  }
  func.func @transform_2(%arg0: i32) -> (i32, i32) {
    %c0_i32 = arith.constant 0 : i32
    %c0_i32_0 = arith.constant 0 : i32
    %c0_i32_1 = arith.constant 0 : i32
    return %c0_i32, %c0_i32_0 : i32, i32
  }
  func.func @transform_3(%arg0: i32) -> (i32, i32) {
    %c0_i32 = arith.constant 0 : i32
    %c0_i32_0 = arith.constant 0 : i32
    %c0_i32_1 = arith.constant 0 : i32
    return %c0_i32, %c0_i32_0 : i32, i32
  }
  func.func @transform_4(%arg0: i32) -> (i32, i32) {
    %c0_i32 = arith.constant 0 : i32
    %c0_i32_0 = arith.constant 0 : i32
    return %arg0, %c0_i32 : i32, i32
  }
  func.func @transform_5(%arg0: i32) -> (i32, i32) {
    %c0_i32 = arith.constant 0 : i32
    %c0_i32_0 = arith.constant 0 : i32
    return %arg0, %c0_i32 : i32, i32
  }
}

</mosaic_0001>

<llo_original>
// kernel: tpu_custom_call.1
$region0: #{tpu_custom_call.1}
  #allocation0 [shape = 'u32[]', space=smem, size = 0x4, offset = 0x4, fixed_abs, tag = 'smem constant byte address 0x4 - core index']
  #allocation1 [shape = 'u32[144,128]{1,0:T(1,128)}', space=vmem, size = 0x12000, scoped, tag = 'internal scratch']
  %s0 = inlined_call_operand.vmem [shape: f32[2,32], index: 0, kind: input, shape index: {}]
  %s1 = inlined_call_operand.vmem [shape: f32[32,4], index: 1, kind: input, shape index: {}]
  %s2 = inlined_call_operand.vmem [shape: f32[1,4], index: 2, kind: input, shape index: {}]
  %s3 = inlined_call_operand.vmem [shape: f32[1,4], index: 3, kind: input, shape index: {}]
  %s4 = inlined_call_operand.hbm [shape: f32[2,4], index: 4, kind: output, shape index: {0}]
  %s5 = inlined_call_operand.hbm [shape: f32[2,4], index: 5, kind: output, shape index: {1}]
  %6 = xla_tuple %s4, %s5
  %s7 = sld [smem:[#allocation0]]
  $region34: #{tpu_custom_call.1} parent=0
    _
  %s9 = ssub.s32 1, %s7
  %s10 = scalar_select 0, %s9, %s7
  $region1: #{tpu_custom_call.1} parent=0
    #allocation2 [shape = 'u8[1024]{0}', space=vmem, size = 0x400, scoped, tag = 'output window, operand 0, single buffered']
    #allocation3 [shape = 's32[1]{0}', space=sflag, size = 0x4, scoped, tag = 'scoped memory for tpu_custom_call.1']
    #allocation4 [shape = 'u8[1024]{0}', space=vmem, size = 0x400, scoped, tag = 'output window, operand 1, single buffered']
    #allocation5 [shape = 's32[1]{0}', space=sflag, size = 0x4, scoped, tag = 'scoped memory for tpu_custom_call.1']
    %11 = vsyncpa [#allocation3], 0
    %12 = vsyncpa [#allocation5], 0
    // Predicated region
    $region2: #{tpu_custom_call.1} parent=1 // pred_check
      _
    $region3: #{tpu_custom_call.1} parent=1 // pred_check_branch
      %14 = sbr.rel (0) target = $region5
    $region4: #{tpu_custom_call.1} parent=1 // pred_region
      _
    $region5: #{tpu_custom_call.1} parent=1 // pred_fallthru
      _
    // Predicated region
    $region6: #{tpu_custom_call.1} parent=1 // pred_check
      _
    $region7: #{tpu_custom_call.1} parent=1 // pred_check_branch
      %16 = sbr.rel (0) target = $region9
    $region8: #{tpu_custom_call.1} parent=1 // pred_region
      _
    $region9: #{tpu_custom_call.1} parent=1 // pred_fallthru
      _
    // Predicated region
    $region10: #{tpu_custom_call.1} parent=1 // pred_check
      _
    $region11: #{tpu_custom_call.1} parent=1 // pred_check_branch
      %18 = sbr.rel (0) target = $region13
    $region12: #{tpu_custom_call.1} parent=1 // pred_region
      _
    $region13: #{tpu_custom_call.1} parent=1 // pred_fallthru
      _
    // Predicated region
    $region14: #{tpu_custom_call.1} parent=1 // pred_check
      _
    $region15: #{tpu_custom_call.1} parent=1 // pred_check_branch
      %20 = sbr.rel (0) target = $region17
    $region16: #{tpu_custom_call.1} parent=1 // pred_region
      _
    $region17: #{tpu_custom_call.1} parent=1 // pred_fallthru
      _
    %v21 = vld [vmem:[%s0] sm:$0x3]
    %v22 = vld [vmem:[%s1] sm:$0xff]
    %v23 = vld [vmem:[%s1 + $0x8] sm:$0xff]
    %v24 = vld [vmem:[%s1 + $0x10] sm:$0xff]
    %v25 = vld [vmem:[%s1 + $0x18] sm:$0xff]
    %v26 = vld [vmem:[%s2] sm:$0x1]
    %v28 = vlaneseq
    %v29 = vshrl.u32 %v28, 7
    %v30 = vsub.s32 0, %v29
    %v31 = vrot.slane %v26, %v30
    %vm33 = vcmask 261120
    %v35 = vsel %vm33, %v21, 0
    %37 = vmatprep.subr.mxu0 0.0
    %38 = vmatpush1.msra.mxu0 %v22
    %39 = vmatprep.subr.mxu0 0.0
    %40 = vmatpush1.msra.mxu0 %v23
    %41 = vmatprep.subr.mxu0 0.0
    %42 = vmatpush1.msra.mxu0 %v24
    %43 = vmatprep.subr.mxu0 0.0
    %44 = vmatpush1.msra.mxu0 %v25
    %45 = vmatprep.subr.mxu0 0.0
    %46 = vmatpush1.msra.mxu0 0.0
    %47 = vmatprep.subr.mxu0 0.0
    %48 = vmatpush1.msra.mxu0 0.0
    %49 = vmatprep.subr.mxu0 0.0
    %50 = vmatpush1.msra.mxu0 0.0
    %51 = vmatprep.subr.mxu0 0.0
    %52 = vmatpush1.msra.mxu0 0.0
    %53 = vmatprep.subr.mxu0 0.0
    %54 = vmatpush1.msra.mxu0 0.0
    %55 = vmatprep.subr.mxu0 0.0
    %56 = vmatpush1.msra.mxu0 0.0
    %57 = vmatprep.subr.mxu0 0.0
    %58 = vmatpush1.msra.mxu0 0.0
    %59 = vmatprep.subr.mxu0 0.0
    %60 = vmatpush1.msra.mxu0 0.0
    %61 = vmatprep.subr.mxu0 0.0
    %62 = vmatpush1.msra.mxu0 0.0
    %63 = vmatprep.subr.mxu0 0.0
    %64 = vmatpush1.msra.mxu0 0.0
    %65 = vmatprep.subr.mxu0 0.0
    %66 = vmatpush1.msra.mxu0 0.0
    %67 = vmatprep.subr.mxu0 0.0
    %68 = vmatpush1.msra.mxu0 0.0
    %69 = vmatprep.subr.mxu0 0.0
    %70 = vmatpush1.msra.mxu0 0.0
    %71 = vmatprep.subr.mxu0 0.0
    %72 = vmatpush1.msra.mxu0 0.0
    %73 = vmatprep.subr.mxu0 0.0
    %74 = vmatpush1.msra.mxu0 0.0
    %75 = vmatprep.subr.mxu0 0.0
    %76 = vmatpush1.msra.mxu0 0.0
    %77 = vmatprep.subr.mxu0 0.0
    %78 = vmatpush1.msra.mxu0 0.0
    %79 = vmatprep.subr.mxu0 0.0
    %80 = vmatpush1.msra.mxu0 0.0
    %81 = vmatprep.subr.mxu0 0.0
    %82 = vmatpush1.msra.mxu0 0.0
    %83 = vmatprep.subr.mxu0 0.0
    %84 = vmatpush1.msra.mxu0 0.0
    %85 = vmatprep.subr.mxu0 0.0
    %86 = vmatpush1.msra.mxu0 0.0
    %87 = vmatprep.subr.mxu0 0.0
    %88 = vmatpush1.msra.mxu0 0.0
    %89 = vmatprep.subr.mxu0 0.0
    %90 = vmatpush1.msra.mxu0 0.0
    %91 = vmatprep.subr.mxu0 0.0
    %92 = vmatpush1.msra.mxu0 0.0
    %93 = vmatprep.subr.mxu0 0.0
    %94 = vmatpush1.msra.mxu0 0.0
    %95 = vmatprep.subr.mxu0 0.0
    %96 = vmatpush1.msra.mxu0 0.0
    %97 = vmatprep.subr.mxu0 0.0
    %98 = vmatpush1.msra.mxu0 0.0
    %99 = vmatprep.subr.mxu0 0.0
    %100 = vmatpush1.msra.mxu0 0.0
    %101 = vmatprep.mubr.f32.mxu0 0.0
    %102 = vmatmul.mubr.f32.gmra.mrb[0].mxu0 %v35
    %v103 = vpop.f32.mrb[0].mxu0
    %v104 = vadd.f32 %v31, %v103
    %v105 = vpop.f32.mrb[0].mxu0
    %106 = vdwg.mxu0
    %vm107 = vcmask 25600
    %108 = vst.msk [vmem:[#allocation2] sm:$0x3] %vm107, %v104
    %v109 = vld [vmem:[%s3] sm:$0x1]
    %v110 = vmul.f32 %v109, 1.442695
    %v111 = vpow.pop %v110
    %v113 = vlaneseq
    %v114 = vshrl.u32 %v113, 7
    %v115 = vsub.s32 0, %v114
    %v116 = vrot.slane %v111, %v115
    %118 = vst.msk [vmem:[#allocation4] sm:$0x3] %vm107, %v116
    // Predicated region
    $region18: #{tpu_custom_call.1} parent=1 // pred_check
      _
    $region19: #{tpu_custom_call.1} parent=1 // pred_check_branch
      %120 = sbr.rel (0) target = $region21
    $region20: #{tpu_custom_call.1} parent=1 // pred_region
      %s122 = ssub.s32 32, 32
      %123 = vsyncadd [#allocation3], %s122
      %s125 = sshll.u32 [#allocation2], 4
      %s126 = int_to_ptr.vmem [resolvable:$true] %s125
      %128 = dma.vmem_to_hbm [thread:$0]  %s126, 32, %s4, [#allocation3]
    $region21: #{tpu_custom_call.1} parent=1 // pred_fallthru
      _
    // Predicated region
    $region22: #{tpu_custom_call.1} parent=1 // pred_check
      _
    $region23: #{tpu_custom_call.1} parent=1 // pred_check_branch
      %130 = sbr.rel (0) target = $region25
    $region24: #{tpu_custom_call.1} parent=1 // pred_region
      %s132 = ssub.s32 32, 32
      %133 = vsyncadd [#allocation5], %s132
      %s135 = sshll.u32 [#allocation4], 4
      %s136 = int_to_ptr.vmem [resolvable:$true] %s135
      %138 = dma.vmem_to_hbm [thread:$0]  %s136, 32, %s5, [#allocation5]
    $region25: #{tpu_custom_call.1} parent=1 // pred_fallthru
      _
    // Predicated region
    $region26: #{tpu_custom_call.1} parent=1 // pred_check
      _
    $region27: #{tpu_custom_call.1} parent=1 // pred_check_branch
      %140 = sbr.rel (0) target = $region29
    $region28: #{tpu_custom_call.1} parent=1 // pred_region
      %141 = dma.done [#allocation3], 32
    $region29: #{tpu_custom_call.1} parent=1 // pred_fallthru
      _
    // Predicated region
    $region30: #{tpu_custom_call.1} parent=1 // pred_check
      _
    $region31: #{tpu_custom_call.1} parent=1 // pred_check_branch
      %143 = sbr.rel (0) target = $region33
    $region32: #{tpu_custom_call.1} parent=1 // pred_region
      %144 = dma.done [#allocation5], 32
    $region33: #{tpu_custom_call.1} parent=1 // pred_fallthru
      _
    %145 = vsyncpa [#allocation3], 1
    %146 = vsyncpa [#allocation5], 1

</llo_original>
